<compile_context>
chip_gen: v6e
topology: v6e:2x2x1
jax: 0.10.0
libtpu: 0.0.40
codegen_flags: <defaults>
</compile_context>

<pallas_src>
import functools
import math

import numpy as np
import jax
import jax.numpy as jnp
from jax.experimental import pallas as pl
from jax.experimental.pallas import tpu as pltpu

EPS_ABS = 1e-12

N_QUBITS = 4              # n_features == n_qubits
DIM = 2 ** N_QUBITS       # statevector dimension
N_OBS = N_QUBITS          # one Z observable per qubit


# ---------------------------------------------------------------------------
# Parameter-independent host constants (built once at import time).
# ---------------------------------------------------------------------------
def _cnot_full_np(control, target, n):
    dim = 2 ** n
    m = np.zeros((dim, dim), dtype=np.float64)
    for b in range(dim):
        out = b ^ (((b >> control) & 1) << target)
        m[out, b] = 1.0
    return m


def _cnot_ring_np():
    u = np.eye(DIM, dtype=np.float64)
    for q in range(N_QUBITS):
        u = _cnot_full_np(q, (q + 1) % N_QUBITS, N_QUBITS) @ u
    return u


_CNOT_RING_NP = _cnot_ring_np()                                         # (DIM, DIM)

# bit_mask[d, q] = bit q of basis index d (little-endian), as a {0,1} selector
_BIT_MASK_NP = (((np.arange(DIM)[:, None] >> np.arange(N_QUBITS)[None, :]) & 1)
                .astype(np.float64))                                    # (DIM, NQ)

# z_sign[d, q] = +1 if bit q of basis index d is 0 else -1
_Z_SIGN_NP = 1.0 - 2.0 * _BIT_MASK_NP[:, :N_OBS]                        # (DIM, N_OBS)


# ---------------------------------------------------------------------------
# On-device construction of the data-independent circuit tail (jit-/grad-safe).
# ---------------------------------------------------------------------------
def _build_tail_unitary(params_f32):
    """CNOT ring followed by the 2nd trainable RY layer, column convention."""
    u = jnp.asarray(_CNOT_RING_NP, dtype=jnp.float32)
    for q in range(N_QUBITS):
        half = params_f32[N_QUBITS + q] * 0.5
        c, s = jnp.cos(half), jnp.sin(half)
        ry = jnp.stack([jnp.stack([c, -s]), jnp.stack([s, c])])          # (2, 2)
        full = jnp.kron(jnp.eye(2 ** (N_QUBITS - 1 - q), dtype=jnp.float32),
                        jnp.kron(ry, jnp.eye(2 ** q, dtype=jnp.float32)))
        u = full @ u
    return u                                                             # (DIM, DIM)


# ---------------------------------------------------------------------------
# Pallas kernel (batch on the lane axis).
#   p1_ref   : SMEM scalar-prefetch, (N_QUBITS,)  first trainable RY layer
#   data_ref : (N_QUBITS, BLOCK_B)   data-encoding angles for this batch block
#   mask_ref : (DIM, N_QUBITS)       {0,1} bit table
#   wt_ref   : (DIM, DIM)            tail unitary U_tail (applied as U @ psi)
#   zt_ref   : (N_OBS, DIM)          Pauli-Z sign matrix, transposed
#   out_ref  : (N_OBS, BLOCK_B)      expectation values (lane-dense)
# ---------------------------------------------------------------------------
def pqc_kernel(p1_ref, data_ref, mask_ref, wt_ref, zt_ref, out_ref):
    # Product state after the two per-qubit RY layers acting on |0...0>:
    #   RY(a) RY(b) |0> = RY(a+b) |0> ; psi[d, i] = prod_q (cos or sin of ang)
    psi = None
    for q in range(N_QUBITS):                       # static unroll, N_QUBITS small
        ang = (data_ref[q:q + 1, :] + p1_ref[q]) * 0.5          # (1, B)
        cq = jnp.cos(ang)
        sq = jnp.sin(ang)
        m = mask_ref[:, q:q + 1]                                # (DIM, 1) in {0,1}
        factor = cq + (sq - cq) * m                             # (DIM, B) via FMA
        psi = factor if psi is None else psi * factor

    # Data-independent circuit tail (CNOT ring + 2nd RY layer), column convention.
    psi = jnp.dot(wt_ref[...], psi, preferred_element_type=jnp.float32)  # (DIM, B)

    # <Z_q> = sum_d sign_q(d) * |psi_d|^2
    prob = psi * psi
    exp_vals = jnp.dot(zt_ref[...], prob, preferred_element_type=jnp.float32)  # (N_OBS, B)

    # ret[|ret| <= EPS_abs] = 0
    out_ref[...] = jnp.where(jnp.abs(exp_vals) <= EPS_ABS,
                             jnp.zeros_like(exp_vals), exp_vals)


# ---------------------------------------------------------------------------
# Wrapper: jitted, batch tiled on the lane axis, constants built on-device.
# ---------------------------------------------------------------------------
def _round_up(x, m):
    return (x + m - 1) // m * m


@functools.partial(jax.jit, static_argnames=("block_b",))
def _pqc_forward_impl(data, params, block_b):
    b, nf = data.shape
    assert nf == N_QUBITS, "this ansatz requires n_features == N_QUBITS"
    b_pad = _round_up(b, block_b)
    n_blocks = b_pad // block_b

    # batch on lanes; pad batch up to a multiple of the block size
    data_t = jnp.pad(data.astype(jnp.float32).T, ((0, 0), (0, b_pad - b)))   # (NQ, Bp)
    p1 = params[:N_QUBITS].astype(jnp.float32)                               # SMEM scalars
    wt = _build_tail_unitary(params.astype(jnp.float32))                     # (DIM, DIM)
    mask = jnp.asarray(_BIT_MASK_NP, dtype=jnp.float32)                      # (DIM, NQ)
    zt = jnp.asarray(_Z_SIGN_NP.T, dtype=jnp.float32)                        # (N_OBS, DIM)

    out_t = pl.pallas_call(
        pqc_kernel,
        out_shape=jax.ShapeDtypeStruct((N_OBS, b_pad), jnp.float32),
        grid_spec=pltpu.PrefetchScalarGridSpec(
            num_scalar_prefetch=1,
            grid=(n_blocks,),
            in_specs=[
                pl.BlockSpec((N_QUBITS, block_b), lambda i, p1_s: (0, i)),
                pl.BlockSpec((DIM, N_QUBITS), lambda i, p1_s: (0, 0)),
                pl.BlockSpec((DIM, DIM), lambda i, p1_s: (0, 0)),
                pl.BlockSpec((N_OBS, DIM), lambda i, p1_s: (0, 0)),
            ],
            out_specs=pl.BlockSpec((N_OBS, block_b), lambda i, p1_s: (0, i)),
        ),
        compiler_params=pltpu.CompilerParams(
            dimension_semantics=("parallel",)),
    )(p1, data_t, mask, wt, zt)

    return out_t[:, :b].T                                                    # (B, N_OBS)


def pqc_layer_forward(data, params, block_b=1024):
    """PQClayer.forward equivalent. data: (B, N_QUBITS), params: (2*N_QUBITS,)."""
    b = data.shape[0]
    bb = min(block_b, _round_up(max(b, 1), 128))     # lane-multiple batch block
    return _pqc_forward_impl(data, params, bb)


# ---------------------------------------------------------------------------
# Pure numpy (float64) reference, mirroring PQCfunction.forward gate-by-gate.
# ---------------------------------------------------------------------------
def _ry_np(theta):
    c, s = math.cos(theta / 2.0), math.sin(theta / 2.0)
    return np.array([[c, -s], [s, c]], dtype=np.float64)


def _single_qubit_full_np(gate2, q, n):
    return np.kron(np.eye(2 ** (n - 1 - q)), np.kron(gate2, np.eye(2 ** q)))


def reference_forward(data, params):
    data = np.asarray(data, dtype=np.float64)
    params = np.asarray(params, dtype=np.float64)
    u_tail = np.eye(DIM, dtype=np.float64)
    for q in range(N_QUBITS):
        u_tail = _cnot_full_np(q, (q + 1) % N_QUBITS, N_QUBITS) @ u_tail
    for q in range(N_QUBITS):
        u_tail = _single_qubit_full_np(_ry_np(float(params[N_QUBITS + q])),
                                       q, N_QUBITS) @ u_tail
    zmat = _Z_SIGN_NP
    ret = []
    for d in data:
        state = np.zeros(DIM, dtype=np.float64)
        state[0] = 1.0
        for q in range(N_QUBITS):
            state = _single_qubit_full_np(_ry_np(d[q]), q, N_QUBITS) @ state
        for q in range(N_QUBITS):
            state = _single_qubit_full_np(_ry_np(params[q]), q, N_QUBITS) @ state
        state = u_tail @ state
        exp_vals = (state ** 2) @ zmat
        exp_vals[np.abs(exp_vals) <= EPS_ABS] = 0.0
        ret.append(exp_vals)
    return np.stack(ret)


if __name__ == "__main__":
    key = jax.random.PRNGKey(0)
    k_params, k_data = jax.random.split(key)
    params = jax.random.uniform(k_params, (2 * N_QUBITS,),
                                minval=-np.pi, maxval=np.pi, dtype=jnp.float32)

    # small batch (single grid block, padded to 128 lanes)
    B = 8
    data = jax.random.uniform(k_data, (B, N_QUBITS),
                              minval=-np.pi, maxval=np.pi, dtype=jnp.float32)
    out = jax.block_until_ready(pqc_layer_forward(data, params))
    ref = reference_forward(np.asarray(data), np.asarray(params))
    np.testing.assert_allclose(np.asarray(out), ref, rtol=1e-4, atol=5e-5)

    # larger, non-multiple batch exercising multiple pipelined grid blocks + padding
    B2 = 300
    data2 = jax.random.uniform(jax.random.PRNGKey(1), (B2, N_QUBITS),
                               minval=-np.pi, maxval=np.pi, dtype=jnp.float32)
    out2 = jax.block_until_ready(pqc_layer_forward(data2, params, block_b=128))
    ref2 = reference_forward(np.asarray(data2), np.asarray(params))
    np.testing.assert_allclose(np.asarray(out2), ref2, rtol=1e-4, atol=5e-5)

    print("KERNEL_OK")
</pallas_src>

<mosaic_0001>
module attributes {stable_mosaic.version = 11 : i64} {
  func.func @pqc_kernel(%arg0: i32, %arg1: memref<4xf32, #tpu.memory_space<smem>>, %arg2: memref<4x128xf32, #tpu.memory_space<vmem>>, %arg3: memref<16x4xf32, #tpu.memory_space<vmem>>, %arg4: memref<16x16xf32, #tpu.memory_space<vmem>>, %arg5: memref<4x16xf32, #tpu.memory_space<vmem>>, %arg6: memref<4x128xf32, #tpu.memory_space<vmem>>) attributes {dimension_semantics = [#tpu.dimension_semantics<parallel>], iteration_bounds = array<i64: 1>, scalar_prefetch = 1 : i64, scratch_operands = 0 : i64, tpu.core_type = #tpu.core_type<tc>, window_params = [{transform_indices = @transform_0, window_bounds = array<i64: 4, 128>}, {pipeline_mode = #tpu.pipeline_mode<synchronous>, transform_indices = @transform_1, window_bounds = array<i64: 16, 4>}, {pipeline_mode = #tpu.pipeline_mode<synchronous>, transform_indices = @transform_2, window_bounds = array<i64: 16, 16>}, {pipeline_mode = #tpu.pipeline_mode<synchronous>, transform_indices = @transform_3, window_bounds = array<i64: 4, 16>}, {transform_indices = @transform_4, window_bounds = array<i64: 4, 128>}]} {
    %c0 = arith.constant 0 : index
    %c0_0 = arith.constant 0 : index
    %0 = vector.load %arg2[%c0, %c0_0] : memref<4x128xf32, #tpu.memory_space<vmem>>, vector<1x128xf32>
    %c0_1 = arith.constant 0 : index
    %1 = memref.load %arg1[%c0_1] : memref<4xf32, #tpu.memory_space<smem>>
    %2 = vector.broadcast %1 : f32 to vector<1x128xf32>
    %3 = arith.addf %0, %2 : vector<1x128xf32>
    %cst = arith.constant 5.000000e-01 : f32
    %4 = vector.broadcast %cst : f32 to vector<1x128xf32>
    %5 = arith.mulf %3, %4 : vector<1x128xf32>
    %6 = math.cos %5 : vector<1x128xf32>
    %7 = math.sin %5 : vector<1x128xf32>
    %c0_2 = arith.constant 0 : index
    %c0_3 = arith.constant 0 : index
    %8 = vector.load %arg3[%c0_2, %c0_3] : memref<16x4xf32, #tpu.memory_space<vmem>>, vector<16x1xf32>
    %9 = arith.subf %7, %6 : vector<1x128xf32>
    %10 = vector.broadcast %9 : vector<1x128xf32> to vector<16x128xf32>
    %11 = vector.broadcast %8 : vector<16x1xf32> to vector<16x128xf32>
    %12 = arith.mulf %10, %11 : vector<16x128xf32>
    %13 = vector.broadcast %6 : vector<1x128xf32> to vector<16x128xf32>
    %14 = arith.addf %13, %12 : vector<16x128xf32>
    %c1 = arith.constant 1 : index
    %c0_4 = arith.constant 0 : index
    %15 = vector.load %arg2[%c1, %c0_4] : memref<4x128xf32, #tpu.memory_space<vmem>>, vector<1x128xf32>
    %c1_5 = arith.constant 1 : index
    %16 = memref.load %arg1[%c1_5] : memref<4xf32, #tpu.memory_space<smem>>
    %17 = vector.broadcast %16 : f32 to vector<1x128xf32>
    %18 = arith.addf %15, %17 : vector<1x128xf32>
    %cst_6 = arith.constant 5.000000e-01 : f32
    %19 = vector.broadcast %cst_6 : f32 to vector<1x128xf32>
    %20 = arith.mulf %18, %19 : vector<1x128xf32>
    %21 = math.cos %20 : vector<1x128xf32>
    %22 = math.sin %20 : vector<1x128xf32>
    %c0_7 = arith.constant 0 : index
    %c1_8 = arith.constant 1 : index
    %23 = vector.load %arg3[%c0_7, %c1_8] : memref<16x4xf32, #tpu.memory_space<vmem>>, vector<16x1xf32>
    %24 = arith.subf %22, %21 : vector<1x128xf32>
    %25 = vector.broadcast %24 : vector<1x128xf32> to vector<16x128xf32>
    %26 = vector.broadcast %23 : vector<16x1xf32> to vector<16x128xf32>
    %27 = arith.mulf %25, %26 : vector<16x128xf32>
    %28 = vector.broadcast %21 : vector<1x128xf32> to vector<16x128xf32>
    %29 = arith.addf %28, %27 : vector<16x128xf32>
    %30 = arith.mulf %14, %29 : vector<16x128xf32>
    %c2 = arith.constant 2 : index
    %c0_9 = arith.constant 0 : index
    %31 = vector.load %arg2[%c2, %c0_9] : memref<4x128xf32, #tpu.memory_space<vmem>>, vector<1x128xf32>
    %c2_10 = arith.constant 2 : index
    %32 = memref.load %arg1[%c2_10] : memref<4xf32, #tpu.memory_space<smem>>
    %33 = vector.broadcast %32 : f32 to vector<1x128xf32>
    %34 = arith.addf %31, %33 : vector<1x128xf32>
    %cst_11 = arith.constant 5.000000e-01 : f32
    %35 = vector.broadcast %cst_11 : f32 to vector<1x128xf32>
    %36 = arith.mulf %34, %35 : vector<1x128xf32>
    %37 = math.cos %36 : vector<1x128xf32>
    %38 = math.sin %36 : vector<1x128xf32>
    %c0_12 = arith.constant 0 : index
    %c2_13 = arith.constant 2 : index
    %39 = vector.load %arg3[%c0_12, %c2_13] : memref<16x4xf32, #tpu.memory_space<vmem>>, vector<16x1xf32>
    %40 = arith.subf %38, %37 : vector<1x128xf32>
    %41 = vector.broadcast %40 : vector<1x128xf32> to vector<16x128xf32>
    %42 = vector.broadcast %39 : vector<16x1xf32> to vector<16x128xf32>
    %43 = arith.mulf %41, %42 : vector<16x128xf32>
    %44 = vector.broadcast %37 : vector<1x128xf32> to vector<16x128xf32>
    %45 = arith.addf %44, %43 : vector<16x128xf32>
    %46 = arith.mulf %30, %45 : vector<16x128xf32>
    %c3 = arith.constant 3 : index
    %c0_14 = arith.constant 0 : index
    %47 = vector.load %arg2[%c3, %c0_14] : memref<4x128xf32, #tpu.memory_space<vmem>>, vector<1x128xf32>
    %c3_15 = arith.constant 3 : index
    %48 = memref.load %arg1[%c3_15] : memref<4xf32, #tpu.memory_space<smem>>
    %49 = vector.broadcast %48 : f32 to vector<1x128xf32>
    %50 = arith.addf %47, %49 : vector<1x128xf32>
    %cst_16 = arith.constant 5.000000e-01 : f32
    %51 = vector.broadcast %cst_16 : f32 to vector<1x128xf32>
    %52 = arith.mulf %50, %51 : vector<1x128xf32>
    %53 = math.cos %52 : vector<1x128xf32>
    %54 = math.sin %52 : vector<1x128xf32>
    %c0_17 = arith.constant 0 : index
    %c3_18 = arith.constant 3 : index
    %55 = vector.load %arg3[%c0_17, %c3_18] : memref<16x4xf32, #tpu.memory_space<vmem>>, vector<16x1xf32>
    %56 = arith.subf %54, %53 : vector<1x128xf32>
    %57 = vector.broadcast %56 : vector<1x128xf32> to vector<16x128xf32>
    %58 = vector.broadcast %55 : vector<16x1xf32> to vector<16x128xf32>
    %59 = arith.mulf %57, %58 : vector<16x128xf32>
    %60 = vector.broadcast %53 : vector<1x128xf32> to vector<16x128xf32>
    %61 = arith.addf %60, %59 : vector<16x128xf32>
    %62 = arith.mulf %46, %61 : vector<16x128xf32>
    %c0_19 = arith.constant 0 : index
    %c0_20 = arith.constant 0 : index
    %63 = vector.load %arg4[%c0_19, %c0_20] : memref<16x16xf32, #tpu.memory_space<vmem>>, vector<16x16xf32>
    %cst_21 = arith.constant dense<0.000000e+00> : vector<16x128xf32>
    %64 = tpu.matmul %63, %62, %cst_21 {dimension_numbers = #tpu.dot_dimension_numbers<[1], [0], [0], [1], [0, 0, 1, 1], [], []>} : vector<16x16xf32>, vector<16x128xf32>, vector<16x128xf32> -> vector<16x128xf32>
    %65 = arith.mulf %64, %64 : vector<16x128xf32>
    %c0_22 = arith.constant 0 : index
    %c0_23 = arith.constant 0 : index
    %66 = vector.load %arg5[%c0_22, %c0_23] : memref<4x16xf32, #tpu.memory_space<vmem>>, vector<4x16xf32>
    %cst_24 = arith.constant dense<0.000000e+00> : vector<4x128xf32>
    %67 = tpu.matmul %66, %65, %cst_24 {dimension_numbers = #tpu.dot_dimension_numbers<[1], [0], [0], [1], [0, 0, 1, 1], [], []>} : vector<4x16xf32>, vector<16x128xf32>, vector<4x128xf32> -> vector<4x128xf32>
    %68 = math.absf %67 : vector<4x128xf32>
    %cst_25 = arith.constant 9.99999996E-13 : f32
    %69 = vector.broadcast %cst_25 : f32 to vector<4x128xf32>
    %70 = arith.cmpf ole, %68, %69 : vector<4x128xf32>
    %cst_26 = arith.constant 0.000000e+00 : f32
    %71 = vector.broadcast %cst_26 : f32 to vector<4x128xf32>
    %72 = arith.select %70, %71, %67 : vector<4x128xi1>, vector<4x128xf32>
    %c0_27 = arith.constant 0 : index
    %c0_28 = arith.constant 0 : index
    %73 = vector.load %arg6[%c0_27, %c0_28] : memref<4x128xf32, #tpu.memory_space<vmem>>, vector<4x128xf32>
    tpu.vector_store %arg6[%c0_27, %c0_28], %72 {strides = array<i32>} : memref<4x128xf32, #tpu.memory_space<vmem>>, vector<4x128xf32>,
    return
  }
  func.func @transform_0(%arg0: i32, %arg1: memref<4xf32, #tpu.memory_space<smem>>) -> (i32, i32) {
    %c0_i32 = arith.constant 0 : i32
    %c0_i32_0 = arith.constant 0 : i32
    return %c0_i32, %arg0 : i32, i32
  }
  func.func @transform_1(%arg0: i32, %arg1: memref<4xf32, #tpu.memory_space<smem>>) -> (i32, i32) {
    %c0_i32 = arith.constant 0 : i32
    %c0_i32_0 = arith.constant 0 : i32
    %c0_i32_1 = arith.constant 0 : i32
    return %c0_i32, %c0_i32_0 : i32, i32
  }
  func.func @transform_2(%arg0: i32, %arg1: memref<4xf32, #tpu.memory_space<smem>>) -> (i32, i32) {
    %c0_i32 = arith.constant 0 : i32
    %c0_i32_0 = arith.constant 0 : i32
    %c0_i32_1 = arith.constant 0 : i32
    return %c0_i32, %c0_i32_0 : i32, i32
  }
  func.func @transform_3(%arg0: i32, %arg1: memref<4xf32, #tpu.memory_space<smem>>) -> (i32, i32) {
    %c0_i32 = arith.constant 0 : i32
    %c0_i32_0 = arith.constant 0 : i32
    %c0_i32_1 = arith.constant 0 : i32
    return %c0_i32, %c0_i32_0 : i32, i32
  }
  func.func @transform_4(%arg0: i32, %arg1: memref<4xf32, #tpu.memory_space<smem>>) -> (i32, i32) {
    %c0_i32 = arith.constant 0 : i32
    %c0_i32_0 = arith.constant 0 : i32
    return %c0_i32, %arg0 : i32, i32
  }
}

</mosaic_0001>

<llo_original>
// kernel: _pqc_forward_impl.1
$region0: #{_pqc_forward_impl.1}
  #allocation0 [shape = 'u32[]', space=smem, size = 0x4, offset = 0x4, fixed_abs, tag = 'smem constant byte address 0x4 - core index']
  #allocation1 [shape = 'u32[144,128]{1,0:T(1,128)}', space=vmem, size = 0x12000, scoped, tag = 'internal scratch']
  #allocation2 [shape = 's32[1]{0}', space=sflag, size = 0x4, scoped, tag = 'scoped memory for _pqc_forward_impl.1']
  #allocation3 [shape = 'u8[512]{0}', space=smem, size = 0x200, scoped, tag = 'prefetched SMEM operand 0']
  %s0 = inlined_call_operand.vmem [shape: f32[4], index: 0, kind: input, shape index: {}]
  %s1 = inlined_call_operand.vmem [shape: f32[4,128], index: 1, kind: input, shape index: {}]
  %s2 = inlined_call_operand.vmem [shape: f32[16,4], index: 2, kind: input, shape index: {}]
  %s3 = inlined_call_operand.vmem [shape: f32[16,16], index: 3, kind: input, shape index: {}]
  %s4 = inlined_call_operand.vmem [shape: f32[4,16], index: 4, kind: input, shape index: {}]
  %s5 = inlined_call_operand.vmem [shape: f32[4,128], index: 5, kind: output, shape index: {}]
  %s6 = sld [smem:[#allocation0]]
  $region26: #{_pqc_forward_impl.1} parent=0
    _
  %s8 = ssub.s32 1, %s6
  %s9 = scalar_select 0, %s8, %s6
  %s10 = sshll.u32 %s0, 4
  %s11 = int_to_ptr.vmem [resolvable:$true] %s10
  %13 = dma.vmem_to_smem %s11, 16, [#allocation3], [#allocation2]
  %14 = dma.done [#allocation2], 16
  %15 = sfence
  // Predicated region
  $region2: #{_pqc_forward_impl.1} parent=0 // pred_check
    _
  $region3: #{_pqc_forward_impl.1} parent=0 // pred_check_branch
    %17 = sbr.rel (0) target = $region5
  $region4: #{_pqc_forward_impl.1} parent=0 // pred_region
    _
  $region5: #{_pqc_forward_impl.1} parent=0 // pred_fallthru
    _
  // Predicated region
  $region6: #{_pqc_forward_impl.1} parent=0 // pred_check
    _
  $region7: #{_pqc_forward_impl.1} parent=0 // pred_check_branch
    %19 = sbr.rel (0) target = $region9
  $region8: #{_pqc_forward_impl.1} parent=0 // pred_region
    _
  $region9: #{_pqc_forward_impl.1} parent=0 // pred_fallthru
    _
  // Predicated region
  $region10: #{_pqc_forward_impl.1} parent=0 // pred_check
    _
  $region11: #{_pqc_forward_impl.1} parent=0 // pred_check_branch
    %21 = sbr.rel (0) target = $region13
  $region12: #{_pqc_forward_impl.1} parent=0 // pred_region
    _
  $region13: #{_pqc_forward_impl.1} parent=0 // pred_fallthru
    _
  // Predicated region
  $region14: #{_pqc_forward_impl.1} parent=0 // pred_check
    _
  $region15: #{_pqc_forward_impl.1} parent=0 // pred_check_branch
    %23 = sbr.rel (0) target = $region17
  $region16: #{_pqc_forward_impl.1} parent=0 // pred_region
    _
  $region17: #{_pqc_forward_impl.1} parent=0 // pred_fallthru
    _
  %v24 = vld [vmem:[%s1] sm:$0x1]
  %s25 = sld [smem:[#allocation3]]
  %v26 = vstv %s25
  %v27 = vadd.f32 %v24, %v26
  %v28 = vmul.f32 %v27, 0.5
  %v29 = vand.u32 2147483647, %v28
  %vm30 = vcmp.le.f32.partialorder %v29, 0.7853982
  %vm31 = vcmp.lt.s32.totalorder %v28, 0
  %v32 = vand.u32 %v28, 2139095040
  %v33 = vshrl.u32 %v32, 23
  %v34 = vsub.s32 %v33, 127
  %v35 = vand.u32 2147483647, %v28
  %v36 = vand.u32 %v35, 8388607
  %v37 = vor.u32 %v36, 8388608
  %v38 = vsub.s32 0, %v37
  %v39 = vadd.s32 %v34, 1
  %vm40 = vcmp.gt.s32.totalorder %v39, 0
  %v41 = vsel %vm40, %v39, 0
  %v42 = vshrl.u32 %v41, 5
  %v43 = vand.u32 %v41, 31
  %v44 = vsub.s32 32, %v43
  %v45 = vshrl.u32 683565275, %v44
  %v46 = vshll.u32 683565275, %v43
  %v47 = vshrl.u32 2475754826, %v44
  %v48 = vor.u32 %v46, %v47
  %v49 = vshll.u32 2475754826, %v43
  %v50 = vshrl.u32 2131351028, %v44
  %v51 = vor.u32 %v49, %v50
  %v52 = vshll.u32 2131351028, %v43
  %v53 = vshrl.u32 2102212464, %v44
  %v54 = vor.u32 %v52, %v53
  %v55 = vshll.u32 2102212464, %v43
  %v56 = vshrl.u32 920167782, %v44
  %v57 = vor.u32 %v55, %v56
  %v58 = vshll.u32 920167782, %v43
  %v59 = vshrl.u32 1326507024, %v44
  %v60 = vor.u32 %v58, %v59
  %vm61 = vcmp.lt.s32.totalorder %v42, 1
  %vm62 = vcmp.lt.s32.totalorder %v42, 2
  %vm63 = vcmp.lt.s32.totalorder %v42, 3
  %vm64 = vcmp.lt.s32.totalorder %v42, 4
  %v65 = vsel %vm61, %v45, %v48
  %v66 = vsel %vm64, %v54, 2102212464
  %v67 = vsel %vm63, %v51, %v66
  %v68 = vsel %vm62, %v65, %v67
  %v69 = vsel %vm61, %v48, %v51
  %v70 = vsel %vm64, %v57, 920167782
  %v71 = vsel %vm63, %v54, %v70
  %v72 = vsel %vm62, %v69, %v71
  %v73 = vsel %vm61, %v51, %v54
  %v74 = vsel %vm64, %v60, 1326507024
  %v75 = vsel %vm63, %v57, %v74
  %v76 = vsel %vm62, %v73, %v75
  %v77 = vshll.u32 %v37, 8
  %v78 = vmul.u32.u64.compose %v77, %v76
  %v79 = vextract.low.u32 %v78
  %v80 = vextract.high.u32 %v78
  %v81 = vmul.u32.u64.compose %v77, %v72
  %v82 = vextract.low.u32 %v81
  %v83 = vextract.high.u32 %v81
  %v84 = vmul.u32 %v77, %v68
  %v85 = vadd.s32 %v80, %v82
  %vm86 = vc.u32 %v80, %v82
  %v87 = vadd.s32 %v83, 1
  %v88 = vsel %vm86, %v87, %v83
  %v89 = vadd.s32 %v84, %v88
  %v90 = vadd.s32 %v89, 536870912
  %v91 = vshrl.u32 %v90, 30
  %v92 = vshll.u32 %v91, 30
  %v93 = vsub.s32 %v89, %v92
  %vm94 = vcmp.lt.s32.totalorder %v93, 0
  %v95 = vsub.s32 0, %v93
  %v96 = vsel %vm94, %v95, %v93
  %v97 = vclz %v96
  %v98 = vsub.s32 %v97, 2
  %vm99 = vcmp.gt.s32.totalorder 0, %v98
  %v100 = vsel %vm99, 0, %v98
  %v101 = vsub.s32 32, %v100
  %v102 = vshll.u32 %v93, %v100
  %v103 = vshrl.u32 %v85, %v101
  %v104 = vor.u32 %v102, %v103
  %v105 = vsub.s32 4294967266, %v100
  %v106 = vadd.s32 %v105, 127
  %v107 = vshll.u32 %v106, 23
  %v108 = vor.u32 4788187, %v107
  %v109 = vand.u32 2147483647, %v108
  %v111 = vcvt.s32.f32 %v104
  %v112 = vmul.f32 %v111, %v109
  %v113 = vxor.u32 %v112, 2147483648
  %v114 = vsel %vm31, %v113, %v112
  %v115 = vsub.s32 4, %v91
  %v116 = vsel %vm31, %v115, %v91
  %v117 = vsel %vm30, %v28, %v114
  %v118 = vsel %vm30, 0, %v116
  %v119 = vcosq.f32.pop %v117
  %v120 = vsinq.f32.pop %v117
  %vm121 = vweird.f32 %v28
  %v122 = vand.u32 %v118, 3
  %vm123 = vcmp.lt.s32.totalorder %v122, 2
  %vm124 = vcmp.eq.s32.totalorder %v122, 0
  %v125 = vxor.u32 %v120, 2147483648
  %v126 = vsel %vm124, %v119, %v125
  %vm127 = vcmp.eq.s32.totalorder %v122, 2
  %v128 = vxor.u32 %v119, 2147483648
  %v129 = vsel %vm127, %v128, %v120
  %v130 = vsel %vm123, %v126, %v129
  %v131 = vsel %vm121, nan, %v130
  %v132 = vand.u32 2147483647, %v28
  %vm133 = vcmp.le.f32.partialorder %v132, 0.7853982
  %vm134 = vcmp.lt.s32.totalorder %v28, 0
  %v135 = vand.u32 %v28, 2139095040
  %v136 = vshrl.u32 %v135, 23
  %v137 = vsub.s32 %v136, 127
  %v138 = vand.u32 2147483647, %v28
  %v139 = vand.u32 %v138, 8388607
  %v140 = vor.u32 %v139, 8388608
  %v141 = vsub.s32 0, %v140
  %v142 = vadd.s32 %v137, 1
  %vm143 = vcmp.gt.s32.totalorder %v142, 0
  %v144 = vsel %vm143, %v142, 0
  %v145 = vshrl.u32 %v144, 5
  %v146 = vand.u32 %v144, 31
  %v147 = vsub.s32 32, %v146
  %v148 = vshrl.u32 683565275, %v147
  %v149 = vshll.u32 683565275, %v146
  %v150 = vshrl.u32 2475754826, %v147
  %v151 = vor.u32 %v149, %v150
  %v152 = vshll.u32 2475754826, %v146
  %v153 = vshrl.u32 2131351028, %v147
  %v154 = vor.u32 %v152, %v153
  %v155 = vshll.u32 2131351028, %v146
  %v156 = vshrl.u32 2102212464, %v147
  %v157 = vor.u32 %v155, %v156
  %v158 = vshll.u32 2102212464, %v146
  %v159 = vshrl.u32 920167782, %v147
  %v160 = vor.u32 %v158, %v159
  %v161 = vshll.u32 920167782, %v146
  %v162 = vshrl.u32 1326507024, %v147
  %v163 = vor.u32 %v161, %v162
  %vm164 = vcmp.lt.s32.totalorder %v145, 1
  %vm165 = vcmp.lt.s32.totalorder %v145, 2
  %vm166 = vcmp.lt.s32.totalorder %v145, 3
  %vm167 = vcmp.lt.s32.totalorder %v145, 4
  %v168 = vsel %vm164, %v148, %v151
  %v169 = vsel %vm167, %v157, 2102212464
  %v170 = vsel %vm166, %v154, %v169
  %v171 = vsel %vm165, %v168, %v170
  %v172 = vsel %vm164, %v151, %v154
  %v173 = vsel %vm167, %v160, 920167782
  %v174 = vsel %vm166, %v157, %v173
  %v175 = vsel %vm165, %v172, %v174
  %v176 = vsel %vm164, %v154, %v157
  %v177 = vsel %vm167, %v163, 1326507024
  %v178 = vsel %vm166, %v160, %v177
  %v179 = vsel %vm165, %v176, %v178
  %v180 = vshll.u32 %v140, 8
  %v181 = vmul.u32.u64.compose %v180, %v179
  %v182 = vextract.low.u32 %v181
  %v183 = vextract.high.u32 %v181
  %v184 = vmul.u32.u64.compose %v180, %v175
  %v185 = vextract.low.u32 %v184
  %v186 = vextract.high.u32 %v184
  %v187 = vmul.u32 %v180, %v171
  %v188 = vadd.s32 %v183, %v185
  %vm189 = vc.u32 %v183, %v185
  %v190 = vadd.s32 %v186, 1
  %v191 = vsel %vm189, %v190, %v186
  %v192 = vadd.s32 %v187, %v191
  %v193 = vadd.s32 %v192, 536870912
  %v194 = vshrl.u32 %v193, 30
  %v195 = vshll.u32 %v194, 30
  %v196 = vsub.s32 %v192, %v195
  %vm197 = vcmp.lt.s32.totalorder %v196, 0
  %v198 = vsub.s32 0, %v196
  %v199 = vsel %vm197, %v198, %v196
  %v200 = vclz %v199
  %v201 = vsub.s32 %v200, 2
  %vm202 = vcmp.gt.s32.totalorder 0, %v201
  %v203 = vsel %vm202, 0, %v201
  %v204 = vsub.s32 32, %v203
  %v205 = vshll.u32 %v196, %v203
  %v206 = vshrl.u32 %v188, %v204
  %v207 = vor.u32 %v205, %v206
  %v208 = vsub.s32 4294967266, %v203
  %v209 = vadd.s32 %v208, 127
  %v210 = vshll.u32 %v209, 23
  %v211 = vor.u32 4788187, %v210
  %v212 = vand.u32 2147483647, %v211
  %v214 = vcvt.s32.f32 %v207
  %v215 = vmul.f32 %v214, %v212
  %v216 = vxor.u32 %v215, 2147483648
  %v217 = vsel %vm134, %v216, %v215
  %v218 = vsub.s32 4, %v194
  %v219 = vsel %vm134, %v218, %v194
  %v220 = vsel %vm133, %v28, %v217
  %v221 = vsel %vm133, 0, %v219
  %v222 = vcosq.f32.pop %v220
  %v223 = vsinq.f32.pop %v220
  %vm224 = vweird.f32 %v28
  %v225 = vadd.s32 %v221, 3
  %v226 = vand.u32 %v225, 3
  %vm227 = vcmp.lt.s32.totalorder %v226, 2
  %vm228 = vcmp.eq.s32.totalorder %v226, 0
  %v229 = vxor.u32 %v223, 2147483648
  %v230 = vsel %vm228, %v222, %v229
  %vm231 = vcmp.eq.s32.totalorder %v226, 2
  %v232 = vxor.u32 %v222, 2147483648
  %v233 = vsel %vm231, %v232, %v223
  %v234 = vsel %vm227, %v230, %v233
  %v235 = vsel %vm224, nan, %v234
  %v236 = vld [vmem:[%s2] sm:$0xff]
  %v237 = vld [vmem:[%s2 + $0x8] sm:$0xff]
  %v238 = vsub.f32 %v235, %v131
  %v239 = vlaneseq
  %v240 = vshrl.u32 %v239, 7
  %v241 = vsub.s32 0, %v240
  %v242 = vrot.slane %v238, %v241
  %244 = vset.pattern.permute.xlu0 0
  %245 = vperm.xlu0 %244, %v236
  %v246 = vpop.permute.xlu0 %245
  %249 = vset.pattern.permute.xlu0 0
  %250 = vperm.xlu0 %249, %v237
  %v251 = vpop.permute.xlu0 %250
  %v253 = vmul.f32 %v242, %v246
  %v254 = vmul.f32 %v242, %v251
  %v255 = vlaneseq
  %v256 = vshrl.u32 %v255, 7
  %v257 = vsub.s32 0, %v256
  %v258 = vrot.slane %v131, %v257
  %v259 = vadd.f32 %v258, %v253
  %v260 = vadd.f32 %v258, %v254
  %v261 = vld [vmem:[%s1 + $0x1] sm:$0x1]
  %s262 = sld [smem:[#allocation3 + $0x1]]
  %v263 = vstv %s262
  %v264 = vadd.f32 %v261, %v263
  %v265 = vmul.f32 %v264, 0.5
  %v266 = vand.u32 2147483647, %v265
  %vm267 = vcmp.le.f32.partialorder %v266, 0.7853982
  %vm268 = vcmp.lt.s32.totalorder %v265, 0
  %v269 = vand.u32 %v265, 2139095040
  %v270 = vshrl.u32 %v269, 23
  %v271 = vsub.s32 %v270, 127
  %v272 = vand.u32 2147483647, %v265
  %v273 = vand.u32 %v272, 8388607
  %v274 = vor.u32 %v273, 8388608
  %v275 = vsub.s32 0, %v274
  %v276 = vadd.s32 %v271, 1
  %vm277 = vcmp.gt.s32.totalorder %v276, 0
  %v278 = vsel %vm277, %v276, 0
  %v279 = vshrl.u32 %v278, 5
  %v280 = vand.u32 %v278, 31
  %v281 = vsub.s32 32, %v280
  %v282 = vshrl.u32 683565275, %v281
  %v283 = vshll.u32 683565275, %v280
  %v284 = vshrl.u32 2475754826, %v281
  %v285 = vor.u32 %v283, %v284
  %v286 = vshll.u32 2475754826, %v280
  %v287 = vshrl.u32 2131351028, %v281
  %v288 = vor.u32 %v286, %v287
  %v289 = vshll.u32 2131351028, %v280
  %v290 = vshrl.u32 2102212464, %v281
  %v291 = vor.u32 %v289, %v290
  %v292 = vshll.u32 2102212464, %v280
  %v293 = vshrl.u32 920167782, %v281
  %v294 = vor.u32 %v292, %v293
  %v295 = vshll.u32 920167782, %v280
  %v296 = vshrl.u32 1326507024, %v281
  %v297 = vor.u32 %v295, %v296
  %vm298 = vcmp.lt.s32.totalorder %v279, 1
  %vm299 = vcmp.lt.s32.totalorder %v279, 2
  %vm300 = vcmp.lt.s32.totalorder %v279, 3
  %vm301 = vcmp.lt.s32.totalorder %v279, 4
  %v302 = vsel %vm298, %v282, %v285
  %v303 = vsel %vm301, %v291, 2102212464
  %v304 = vsel %vm300, %v288, %v303
  %v305 = vsel %vm299, %v302, %v304
  %v306 = vsel %vm298, %v285, %v288
  %v307 = vsel %vm301, %v294, 920167782
  %v308 = vsel %vm300, %v291, %v307
  %v309 = vsel %vm299, %v306, %v308
  %v310 = vsel %vm298, %v288, %v291
  %v311 = vsel %vm301, %v297, 1326507024
  %v312 = vsel %vm300, %v294, %v311
  %v313 = vsel %vm299, %v310, %v312
  %v314 = vshll.u32 %v274, 8
  %v315 = vmul.u32.u64.compose %v314, %v313
  %v316 = vextract.low.u32 %v315
  %v317 = vextract.high.u32 %v315
  %v318 = vmul.u32.u64.compose %v314, %v309
  %v319 = vextract.low.u32 %v318
  %v320 = vextract.high.u32 %v318
  %v321 = vmul.u32 %v314, %v305
  %v322 = vadd.s32 %v317, %v319
  %vm323 = vc.u32 %v317, %v319
  %v324 = vadd.s32 %v320, 1
  %v325 = vsel %vm323, %v324, %v320
  %v326 = vadd.s32 %v321, %v325
  %v327 = vadd.s32 %v326, 536870912
  %v328 = vshrl.u32 %v327, 30
  %v329 = vshll.u32 %v328, 30
  %v330 = vsub.s32 %v326, %v329
  %vm331 = vcmp.lt.s32.totalorder %v330, 0
  %v332 = vsub.s32 0, %v330
  %v333 = vsel %vm331, %v332, %v330
  %v334 = vclz %v333
  %v335 = vsub.s32 %v334, 2
  %vm336 = vcmp.gt.s32.totalorder 0, %v335
  %v337 = vsel %vm336, 0, %v335
  %v338 = vsub.s32 32, %v337
  %v339 = vshll.u32 %v330, %v337
  %v340 = vshrl.u32 %v322, %v338
  %v341 = vor.u32 %v339, %v340
  %v342 = vsub.s32 4294967266, %v337
  %v343 = vadd.s32 %v342, 127
  %v344 = vshll.u32 %v343, 23
  %v345 = vor.u32 4788187, %v344
  %v346 = vand.u32 2147483647, %v345
  %v348 = vcvt.s32.f32 %v341
  %v349 = vmul.f32 %v348, %v346
  %v350 = vxor.u32 %v349, 2147483648
  %v351 = vsel %vm268, %v350, %v349
  %v352 = vsub.s32 4, %v328
  %v353 = vsel %vm268, %v352, %v328
  %v354 = vsel %vm267, %v265, %v351
  %v355 = vsel %vm267, 0, %v353
  %v356 = vcosq.f32.pop %v354
  %v357 = vsinq.f32.pop %v354
  %vm358 = vweird.f32 %v265
  %v359 = vand.u32 %v355, 3
  %vm360 = vcmp.lt.s32.totalorder %v359, 2
  %vm361 = vcmp.eq.s32.totalorder %v359, 0
  %v362 = vxor.u32 %v357, 2147483648
  %v363 = vsel %vm361, %v356, %v362
  %vm364 = vcmp.eq.s32.totalorder %v359, 2
  %v365 = vxor.u32 %v356, 2147483648
  %v366 = vsel %vm364, %v365, %v357
  %v367 = vsel %vm360, %v363, %v366
  %v368 = vsel %vm358, nan, %v367
  %v369 = vand.u32 2147483647, %v265
  %vm370 = vcmp.le.f32.partialorder %v369, 0.7853982
  %vm371 = vcmp.lt.s32.totalorder %v265, 0
  %v372 = vand.u32 %v265, 2139095040
  %v373 = vshrl.u32 %v372, 23
  %v374 = vsub.s32 %v373, 127
  %v375 = vand.u32 2147483647, %v265
  %v376 = vand.u32 %v375, 8388607
  %v377 = vor.u32 %v376, 8388608
  %v378 = vsub.s32 0, %v377
  %v379 = vadd.s32 %v374, 1
  %vm380 = vcmp.gt.s32.totalorder %v379, 0
  %v381 = vsel %vm380, %v379, 0
  %v382 = vshrl.u32 %v381, 5
  %v383 = vand.u32 %v381, 31
  %v384 = vsub.s32 32, %v383
  %v385 = vshrl.u32 683565275, %v384
  %v386 = vshll.u32 683565275, %v383
  %v387 = vshrl.u32 2475754826, %v384
  %v388 = vor.u32 %v386, %v387
  %v389 = vshll.u32 2475754826, %v383
  %v390 = vshrl.u32 2131351028, %v384
  %v391 = vor.u32 %v389, %v390
  %v392 = vshll.u32 2131351028, %v383
  %v393 = vshrl.u32 2102212464, %v384
  %v394 = vor.u32 %v392, %v393
  %v395 = vshll.u32 2102212464, %v383
  %v396 = vshrl.u32 920167782, %v384
  %v397 = vor.u32 %v395, %v396
  %v398 = vshll.u32 920167782, %v383
  %v399 = vshrl.u32 1326507024, %v384
  %v400 = vor.u32 %v398, %v399
  %vm401 = vcmp.lt.s32.totalorder %v382, 1
  %vm402 = vcmp.lt.s32.totalorder %v382, 2
  %vm403 = vcmp.lt.s32.totalorder %v382, 3
  %vm404 = vcmp.lt.s32.totalorder %v382, 4
  %v405 = vsel %vm401, %v385, %v388
  %v406 = vsel %vm404, %v394, 2102212464
  %v407 = vsel %vm403, %v391, %v406
  %v408 = vsel %vm402, %v405, %v407
  %v409 = vsel %vm401, %v388, %v391
  %v410 = vsel %vm404, %v397, 920167782
  %v411 = vsel %vm403, %v394, %v410
  %v412 = vsel %vm402, %v409, %v411
  %v413 = vsel %vm401, %v391, %v394
  %v414 = vsel %vm404, %v400, 1326507024
  %v415 = vsel %vm403, %v397, %v414
  %v416 = vsel %vm402, %v413, %v415
  %v417 = vshll.u32 %v377, 8
  %v418 = vmul.u32.u64.compose %v417, %v416
  %v419 = vextract.low.u32 %v418
  %v420 = vextract.high.u32 %v418
  %v421 = vmul.u32.u64.compose %v417, %v412
  %v422 = vextract.low.u32 %v421
  %v423 = vextract.high.u32 %v421
  %v424 = vmul.u32 %v417, %v408
  %v425 = vadd.s32 %v420, %v422
  %vm426 = vc.u32 %v420, %v422
  %v427 = vadd.s32 %v423, 1
  %v428 = vsel %vm426, %v427, %v423
  %v429 = vadd.s32 %v424, %v428
  %v430 = vadd.s32 %v429, 536870912
  %v431 = vshrl.u32 %v430, 30
  %v432 = vshll.u32 %v431, 30
  %v433 = vsub.s32 %v429, %v432
  %vm434 = vcmp.lt.s32.totalorder %v433, 0
  %v435 = vsub.s32 0, %v433
  %v436 = vsel %vm434, %v435, %v433
  %v437 = vclz %v436
  %v438 = vsub.s32 %v437, 2
  %vm439 = vcmp.gt.s32.totalorder 0, %v438
  %v440 = vsel %vm439, 0, %v438
  %v441 = vsub.s32 32, %v440
  %v442 = vshll.u32 %v433, %v440
  %v443 = vshrl.u32 %v425, %v441
  %v444 = vor.u32 %v442, %v443
  %v445 = vsub.s32 4294967266, %v440
  %v446 = vadd.s32 %v445, 127
  %v447 = vshll.u32 %v446, 23
  %v448 = vor.u32 4788187, %v447
  %v449 = vand.u32 2147483647, %v448
  %v451 = vcvt.s32.f32 %v444
  %v452 = vmul.f32 %v451, %v449
  %v453 = vxor.u32 %v452, 2147483648
  %v454 = vsel %vm371, %v453, %v452
  %v455 = vsub.s32 4, %v431
  %v456 = vsel %vm371, %v455, %v431
  %v457 = vsel %vm370, %v265, %v454
  %v458 = vsel %vm370, 0, %v456
  %v459 = vcosq.f32.pop %v457
  %v460 = vsinq.f32.pop %v457
  %vm461 = vweird.f32 %v265
  %v462 = vadd.s32 %v458, 3
  %v463 = vand.u32 %v462, 3
  %vm464 = vcmp.lt.s32.totalorder %v463, 2
  %vm465 = vcmp.eq.s32.totalorder %v463, 0
  %v466 = vxor.u32 %v460, 2147483648
  %v467 = vsel %vm465, %v459, %v466
  %vm468 = vcmp.eq.s32.totalorder %v463, 2
  %v469 = vxor.u32 %v459, 2147483648
  %v470 = vsel %vm468, %v469, %v460
  %v471 = vsel %vm464, %v467, %v470
  %v472 = vsel %vm461, nan, %v471
  %v473 = vsub.f32 %v472, %v368
  %v474 = vlaneseq
  %v475 = vshrl.u32 %v474, 7
  %v476 = vsub.s32 0, %v475
  %v477 = vrot.slane %v473, %v476
  %478 = vset.pattern.permute.xlu0 1
  %479 = vperm.xlu0 %478, %v236
  %v480 = vpop.permute.xlu0 %479
  %482 = vset.pattern.permute.xlu0 1
  %483 = vperm.xlu0 %482, %v237
  %v484 = vpop.permute.xlu0 %483
  %v486 = vmul.f32 %v477, %v480
  %v487 = vmul.f32 %v477, %v484
  %v488 = vlaneseq
  %v489 = vshrl.u32 %v488, 7
  %v490 = vsub.s32 0, %v489
  %v491 = vrot.slane %v368, %v490
  %v492 = vadd.f32 %v491, %v486
  %v493 = vadd.f32 %v491, %v487
  %v494 = vmul.f32 %v259, %v492
  %v495 = vmul.f32 %v260, %v493
  %v496 = vld [vmem:[%s1 + $0x2] sm:$0x1]
  %s497 = sld [smem:[#allocation3 + $0x2]]
  %v498 = vstv %s497
  %v499 = vadd.f32 %v496, %v498
  %v500 = vmul.f32 %v499, 0.5
  %v501 = vand.u32 2147483647, %v500
  %vm502 = vcmp.le.f32.partialorder %v501, 0.7853982
  %vm503 = vcmp.lt.s32.totalorder %v500, 0
  %v504 = vand.u32 %v500, 2139095040
  %v505 = vshrl.u32 %v504, 23
  %v506 = vsub.s32 %v505, 127
  %v507 = vand.u32 2147483647, %v500
  %v508 = vand.u32 %v507, 8388607
  %v509 = vor.u32 %v508, 8388608
  %v510 = vsub.s32 0, %v509
  %v511 = vadd.s32 %v506, 1
  %vm512 = vcmp.gt.s32.totalorder %v511, 0
  %v513 = vsel %vm512, %v511, 0
  %v514 = vshrl.u32 %v513, 5
  %v515 = vand.u32 %v513, 31
  %v516 = vsub.s32 32, %v515
  %v517 = vshrl.u32 683565275, %v516
  %v518 = vshll.u32 683565275, %v515
  %v519 = vshrl.u32 2475754826, %v516
  %v520 = vor.u32 %v518, %v519
  %v521 = vshll.u32 2475754826, %v515
  %v522 = vshrl.u32 2131351028, %v516
  %v523 = vor.u32 %v521, %v522
  %v524 = vshll.u32 2131351028, %v515
  %v525 = vshrl.u32 2102212464, %v516
  %v526 = vor.u32 %v524, %v525
  %v527 = vshll.u32 2102212464, %v515
  %v528 = vshrl.u32 920167782, %v516
  %v529 = vor.u32 %v527, %v528
  %v530 = vshll.u32 920167782, %v515
  %v531 = vshrl.u32 1326507024, %v516
  %v532 = vor.u32 %v530, %v531
  %vm533 = vcmp.lt.s32.totalorder %v514, 1
  %vm534 = vcmp.lt.s32.totalorder %v514, 2
  %vm535 = vcmp.lt.s32.totalorder %v514, 3
  %vm536 = vcmp.lt.s32.totalorder %v514, 4
  %v537 = vsel %vm533, %v517, %v520
  %v538 = vsel %vm536, %v526, 2102212464
  %v539 = vsel %vm535, %v523, %v538
  %v540 = vsel %vm534, %v537, %v539
  %v541 = vsel %vm533, %v520, %v523
  %v542 = vsel %vm536, %v529, 920167782
  %v543 = vsel %vm535, %v526, %v542
  %v544 = vsel %vm534, %v541, %v543
  %v545 = vsel %vm533, %v523, %v526
  %v546 = vsel %vm536, %v532, 1326507024
  %v547 = vsel %vm535, %v529, %v546
  %v548 = vsel %vm534, %v545, %v547
  %v549 = vshll.u32 %v509, 8
  %v550 = vmul.u32.u64.compose %v549, %v548
  %v551 = vextract.low.u32 %v550
  %v552 = vextract.high.u32 %v550
  %v553 = vmul.u32.u64.compose %v549, %v544
  %v554 = vextract.low.u32 %v553
  %v555 = vextract.high.u32 %v553
  %v556 = vmul.u32 %v549, %v540
  %v557 = vadd.s32 %v552, %v554
  %vm558 = vc.u32 %v552, %v554
  %v559 = vadd.s32 %v555, 1
  %v560 = vsel %vm558, %v559, %v555
  %v561 = vadd.s32 %v556, %v560
  %v562 = vadd.s32 %v561, 536870912
  %v563 = vshrl.u32 %v562, 30
  %v564 = vshll.u32 %v563, 30
  %v565 = vsub.s32 %v561, %v564
  %vm566 = vcmp.lt.s32.totalorder %v565, 0
  %v567 = vsub.s32 0, %v565
  %v568 = vsel %vm566, %v567, %v565
  %v569 = vclz %v568
  %v570 = vsub.s32 %v569, 2
  %vm571 = vcmp.gt.s32.totalorder 0, %v570
  %v572 = vsel %vm571, 0, %v570
  %v573 = vsub.s32 32, %v572
  %v574 = vshll.u32 %v565, %v572
  %v575 = vshrl.u32 %v557, %v573
  %v576 = vor.u32 %v574, %v575
  %v577 = vsub.s32 4294967266, %v572
  %v578 = vadd.s32 %v577, 127
  %v579 = vshll.u32 %v578, 23
  %v580 = vor.u32 4788187, %v579
  %v581 = vand.u32 2147483647, %v580
  %v583 = vcvt.s32.f32 %v576
  %v584 = vmul.f32 %v583, %v581
  %v585 = vxor.u32 %v584, 2147483648
  %v586 = vsel %vm503, %v585, %v584
  %v587 = vsub.s32 4, %v563
  %v588 = vsel %vm503, %v587, %v563
  %v589 = vsel %vm502, %v500, %v586
  %v590 = vsel %vm502, 0, %v588
  %v591 = vcosq.f32.pop %v589
  %v592 = vsinq.f32.pop %v589
  %vm593 = vweird.f32 %v500
  %v594 = vand.u32 %v590, 3
  %vm595 = vcmp.lt.s32.totalorder %v594, 2
  %vm596 = vcmp.eq.s32.totalorder %v594, 0
  %v597 = vxor.u32 %v592, 2147483648
  %v598 = vsel %vm596, %v591, %v597
  %vm599 = vcmp.eq.s32.totalorder %v594, 2
  %v600 = vxor.u32 %v591, 2147483648
  %v601 = vsel %vm599, %v600, %v592
  %v602 = vsel %vm595, %v598, %v601
  %v603 = vsel %vm593, nan, %v602
  %v604 = vand.u32 2147483647, %v500
  %vm605 = vcmp.le.f32.partialorder %v604, 0.7853982
  %vm606 = vcmp.lt.s32.totalorder %v500, 0
  %v607 = vand.u32 %v500, 2139095040
  %v608 = vshrl.u32 %v607, 23
  %v609 = vsub.s32 %v608, 127
  %v610 = vand.u32 2147483647, %v500
  %v611 = vand.u32 %v610, 8388607
  %v612 = vor.u32 %v611, 8388608
  %v613 = vsub.s32 0, %v612
  %v614 = vadd.s32 %v609, 1
  %vm615 = vcmp.gt.s32.totalorder %v614, 0
  %v616 = vsel %vm615, %v614, 0
  %v617 = vshrl.u32 %v616, 5
  %v618 = vand.u32 %v616, 31
  %v619 = vsub.s32 32, %v618
  %v620 = vshrl.u32 683565275, %v619
  %v621 = vshll.u32 683565275, %v618
  %v622 = vshrl.u32 2475754826, %v619
  %v623 = vor.u32 %v621, %v622
  %v624 = vshll.u32 2475754826, %v618
  %v625 = vshrl.u32 2131351028, %v619
  %v626 = vor.u32 %v624, %v625
  %v627 = vshll.u32 2131351028, %v618
  %v628 = vshrl.u32 2102212464, %v619
  %v629 = vor.u32 %v627, %v628
  %v630 = vshll.u32 2102212464, %v618
  %v631 = vshrl.u32 920167782, %v619
  %v632 = vor.u32 %v630, %v631
  %v633 = vshll.u32 920167782, %v618
  %v634 = vshrl.u32 1326507024, %v619
  %v635 = vor.u32 %v633, %v634
  %vm636 = vcmp.lt.s32.totalorder %v617, 1
  %vm637 = vcmp.lt.s32.totalorder %v617, 2
  %vm638 = vcmp.lt.s32.totalorder %v617, 3
  %vm639 = vcmp.lt.s32.totalorder %v617, 4
  %v640 = vsel %vm636, %v620, %v623
  %v641 = vsel %vm639, %v629, 2102212464
  %v642 = vsel %vm638, %v626, %v641
  %v643 = vsel %vm637, %v640, %v642
  %v644 = vsel %vm636, %v623, %v626
  %v645 = vsel %vm639, %v632, 920167782
  %v646 = vsel %vm638, %v629, %v645
  %v647 = vsel %vm637, %v644, %v646
  %v648 = vsel %vm636, %v626, %v629
  %v649 = vsel %vm639, %v635, 1326507024
  %v650 = vsel %vm638, %v632, %v649
  %v651 = vsel %vm637, %v648, %v650
  %v652 = vshll.u32 %v612, 8
  %v653 = vmul.u32.u64.compose %v652, %v651
  %v654 = vextract.low.u32 %v653
  %v655 = vextract.high.u32 %v653
  %v656 = vmul.u32.u64.compose %v652, %v647
  %v657 = vextract.low.u32 %v656
  %v658 = vextract.high.u32 %v656
  %v659 = vmul.u32 %v652, %v643
  %v660 = vadd.s32 %v655, %v657
  %vm661 = vc.u32 %v655, %v657
  %v662 = vadd.s32 %v658, 1
  %v663 = vsel %vm661, %v662, %v658
  %v664 = vadd.s32 %v659, %v663
  %v665 = vadd.s32 %v664, 536870912
  %v666 = vshrl.u32 %v665, 30
  %v667 = vshll.u32 %v666, 30
  %v668 = vsub.s32 %v664, %v667
  %vm669 = vcmp.lt.s32.totalorder %v668, 0
  %v670 = vsub.s32 0, %v668
  %v671 = vsel %vm669, %v670, %v668
  %v672 = vclz %v671
  %v673 = vsub.s32 %v672, 2
  %vm674 = vcmp.gt.s32.totalorder 0, %v673
  %v675 = vsel %vm674, 0, %v673
  %v676 = vsub.s32 32, %v675
  %v677 = vshll.u32 %v668, %v675
  %v678 = vshrl.u32 %v660, %v676
  %v679 = vor.u32 %v677, %v678
  %v680 = vsub.s32 4294967266, %v675
  %v681 = vadd.s32 %v680, 127
  %v682 = vshll.u32 %v681, 23
  %v683 = vor.u32 4788187, %v682
  %v684 = vand.u32 2147483647, %v683
  %v686 = vcvt.s32.f32 %v679
  %v687 = vmul.f32 %v686, %v684
  %v688 = vxor.u32 %v687, 2147483648
  %v689 = vsel %vm606, %v688, %v687
  %v690 = vsub.s32 4, %v666
  %v691 = vsel %vm606, %v690, %v666
  %v692 = vsel %vm605, %v500, %v689
  %v693 = vsel %vm605, 0, %v691
  %v694 = vcosq.f32.pop %v692
  %v695 = vsinq.f32.pop %v692
  %vm696 = vweird.f32 %v500
  %v697 = vadd.s32 %v693, 3
  %v698 = vand.u32 %v697, 3
  %vm699 = vcmp.lt.s32.totalorder %v698, 2
  %vm700 = vcmp.eq.s32.totalorder %v698, 0
  %v701 = vxor.u32 %v695, 2147483648
  %v702 = vsel %vm700, %v694, %v701
  %vm703 = vcmp.eq.s32.totalorder %v698, 2
  %v704 = vxor.u32 %v694, 2147483648
  %v705 = vsel %vm703, %v704, %v695
  %v706 = vsel %vm699, %v702, %v705
  %v707 = vsel %vm696, nan, %v706
  %v708 = vsub.f32 %v707, %v603
  %v709 = vlaneseq
  %v710 = vshrl.u32 %v709, 7
  %v711 = vsub.s32 0, %v710
  %v712 = vrot.slane %v708, %v711
  %713 = vset.pattern.permute.xlu0 2
  %714 = vperm.xlu0 %713, %v236
  %v715 = vpop.permute.xlu0 %714
  %717 = vset.pattern.permute.xlu0 2
  %718 = vperm.xlu0 %717, %v237
  %v719 = vpop.permute.xlu0 %718
  %v721 = vmul.f32 %v712, %v715
  %v722 = vmul.f32 %v712, %v719
  %v723 = vlaneseq
  %v724 = vshrl.u32 %v723, 7
  %v725 = vsub.s32 0, %v724
  %v726 = vrot.slane %v603, %v725
  %v727 = vadd.f32 %v726, %v721
  %v728 = vadd.f32 %v726, %v722
  %v729 = vmul.f32 %v494, %v727
  %v730 = vmul.f32 %v495, %v728
  %v731 = vld [vmem:[%s1 + $0x3] sm:$0x1]
  %s732 = sld [smem:[#allocation3 + $0x3]]
  %v733 = vstv %s732
  %v734 = vadd.f32 %v731, %v733
  %v735 = vmul.f32 %v734, 0.5
  %v736 = vand.u32 2147483647, %v735
  %vm737 = vcmp.le.f32.partialorder %v736, 0.7853982
  %vm738 = vcmp.lt.s32.totalorder %v735, 0
  %v739 = vand.u32 %v735, 2139095040
  %v740 = vshrl.u32 %v739, 23
  %v741 = vsub.s32 %v740, 127
  %v742 = vand.u32 2147483647, %v735
  %v743 = vand.u32 %v742, 8388607
  %v744 = vor.u32 %v743, 8388608
  %v745 = vsub.s32 0, %v744
  %v746 = vadd.s32 %v741, 1
  %vm747 = vcmp.gt.s32.totalorder %v746, 0
  %v748 = vsel %vm747, %v746, 0
  %v749 = vshrl.u32 %v748, 5
  %v750 = vand.u32 %v748, 31
  %v751 = vsub.s32 32, %v750
  %v752 = vshrl.u32 683565275, %v751
  %v753 = vshll.u32 683565275, %v750
  %v754 = vshrl.u32 2475754826, %v751
  %v755 = vor.u32 %v753, %v754
  %v756 = vshll.u32 2475754826, %v750
  %v757 = vshrl.u32 2131351028, %v751
  %v758 = vor.u32 %v756, %v757
  %v759 = vshll.u32 2131351028, %v750
  %v760 = vshrl.u32 2102212464, %v751
  %v761 = vor.u32 %v759, %v760
  %v762 = vshll.u32 2102212464, %v750
  %v763 = vshrl.u32 920167782, %v751
  %v764 = vor.u32 %v762, %v763
  %v765 = vshll.u32 920167782, %v750
  %v766 = vshrl.u32 1326507024, %v751
  %v767 = vor.u32 %v765, %v766
  %vm768 = vcmp.lt.s32.totalorder %v749, 1
  %vm769 = vcmp.lt.s32.totalorder %v749, 2
  %vm770 = vcmp.lt.s32.totalorder %v749, 3
  %vm771 = vcmp.lt.s32.totalorder %v749, 4
  %v772 = vsel %vm768, %v752, %v755
  %v773 = vsel %vm771, %v761, 2102212464
  %v774 = vsel %vm770, %v758, %v773
  %v775 = vsel %vm769, %v772, %v774
  %v776 = vsel %vm768, %v755, %v758
  %v777 = vsel %vm771, %v764, 920167782
  %v778 = vsel %vm770, %v761, %v777
  %v779 = vsel %vm769, %v776, %v778
  %v780 = vsel %vm768, %v758, %v761
  %v781 = vsel %vm771, %v767, 1326507024
  %v782 = vsel %vm770, %v764, %v781
  %v783 = vsel %vm769, %v780, %v782
  %v784 = vshll.u32 %v744, 8
  %v785 = vmul.u32.u64.compose %v784, %v783
  %v786 = vextract.low.u32 %v785
  %v787 = vextract.high.u32 %v785
  %v788 = vmul.u32.u64.compose %v784, %v779
  %v789 = vextract.low.u32 %v788
  %v790 = vextract.high.u32 %v788
  %v791 = vmul.u32 %v784, %v775
  %v792 = vadd.s32 %v787, %v789
  %vm793 = vc.u32 %v787, %v789
  %v794 = vadd.s32 %v790, 1
  %v795 = vsel %vm793, %v794, %v790
  %v796 = vadd.s32 %v791, %v795
  %v797 = vadd.s32 %v796, 536870912
  %v798 = vshrl.u32 %v797, 30
  %v799 = vshll.u32 %v798, 30
  %v800 = vsub.s32 %v796, %v799
  %vm801 = vcmp.lt.s32.totalorder %v800, 0
  %v802 = vsub.s32 0, %v800
  %v803 = vsel %vm801, %v802, %v800
  %v804 = vclz %v803
  %v805 = vsub.s32 %v804, 2
  %vm806 = vcmp.gt.s32.totalorder 0, %v805
  %v807 = vsel %vm806, 0, %v805
  %v808 = vsub.s32 32, %v807
  %v809 = vshll.u32 %v800, %v807
  %v810 = vshrl.u32 %v792, %v808
  %v811 = vor.u32 %v809, %v810
  %v812 = vsub.s32 4294967266, %v807
  %v813 = vadd.s32 %v812, 127
  %v814 = vshll.u32 %v813, 23
  %v815 = vor.u32 4788187, %v814
  %v816 = vand.u32 2147483647, %v815
  %v818 = vcvt.s32.f32 %v811
  %v819 = vmul.f32 %v818, %v816
  %v820 = vxor.u32 %v819, 2147483648
  %v821 = vsel %vm738, %v820, %v819
  %v822 = vsub.s32 4, %v798
  %v823 = vsel %vm738, %v822, %v798
  %v824 = vsel %vm737, %v735, %v821
  %v825 = vsel %vm737, 0, %v823
  %v826 = vcosq.f32.pop %v824
  %v827 = vsinq.f32.pop %v824
  %vm828 = vweird.f32 %v735
  %v829 = vand.u32 %v825, 3
  %vm830 = vcmp.lt.s32.totalorder %v829, 2
  %vm831 = vcmp.eq.s32.totalorder %v829, 0
  %v832 = vxor.u32 %v827, 2147483648
  %v833 = vsel %vm831, %v826, %v832
  %vm834 = vcmp.eq.s32.totalorder %v829, 2
  %v835 = vxor.u32 %v826, 2147483648
  %v836 = vsel %vm834, %v835, %v827
  %v837 = vsel %vm830, %v833, %v836
  %v838 = vsel %vm828, nan, %v837
  %v839 = vand.u32 2147483647, %v735
  %vm840 = vcmp.le.f32.partialorder %v839, 0.7853982
  %vm841 = vcmp.lt.s32.totalorder %v735, 0
  %v842 = vand.u32 %v735, 2139095040
  %v843 = vshrl.u32 %v842, 23
  %v844 = vsub.s32 %v843, 127
  %v845 = vand.u32 2147483647, %v735
  %v846 = vand.u32 %v845, 8388607
  %v847 = vor.u32 %v846, 8388608
  %v848 = vsub.s32 0, %v847
  %v849 = vadd.s32 %v844, 1
  %vm850 = vcmp.gt.s32.totalorder %v849, 0
  %v851 = vsel %vm850, %v849, 0
  %v852 = vshrl.u32 %v851, 5
  %v853 = vand.u32 %v851, 31
  %v854 = vsub.s32 32, %v853
  %v855 = vshrl.u32 683565275, %v854
  %v856 = vshll.u32 683565275, %v853
  %v857 = vshrl.u32 2475754826, %v854
  %v858 = vor.u32 %v856, %v857
  %v859 = vshll.u32 2475754826, %v853
  %v860 = vshrl.u32 2131351028, %v854
  %v861 = vor.u32 %v859, %v860
  %v862 = vshll.u32 2131351028, %v853
  %v863 = vshrl.u32 2102212464, %v854
  %v864 = vor.u32 %v862, %v863
  %v865 = vshll.u32 2102212464, %v853
  %v866 = vshrl.u32 920167782, %v854
  %v867 = vor.u32 %v865, %v866
  %v868 = vshll.u32 920167782, %v853
  %v869 = vshrl.u32 1326507024, %v854
  %v870 = vor.u32 %v868, %v869
  %vm871 = vcmp.lt.s32.totalorder %v852, 1
  %vm872 = vcmp.lt.s32.totalorder %v852, 2
  %vm873 = vcmp.lt.s32.totalorder %v852, 3
  %vm874 = vcmp.lt.s32.totalorder %v852, 4
  %v875 = vsel %vm871, %v855, %v858
  %v876 = vsel %vm874, %v864, 2102212464
  %v877 = vsel %vm873, %v861, %v876
  %v878 = vsel %vm872, %v875, %v877
  %v879 = vsel %vm871, %v858, %v861
  %v880 = vsel %vm874, %v867, 920167782
  %v881 = vsel %vm873, %v864, %v880
  %v882 = vsel %vm872, %v879, %v881
  %v883 = vsel %vm871, %v861, %v864
  %v884 = vsel %vm874, %v870, 1326507024
  %v885 = vsel %vm873, %v867, %v884
  %v886 = vsel %vm872, %v883, %v885
  %v887 = vshll.u32 %v847, 8
  %v888 = vmul.u32.u64.compose %v887, %v886
  %v889 = vextract.low.u32 %v888
  %v890 = vextract.high.u32 %v888
  %v891 = vmul.u32.u64.compose %v887, %v882
  %v892 = vextract.low.u32 %v891
  %v893 = vextract.high.u32 %v891
  %v894 = vmul.u32 %v887, %v878
  %v895 = vadd.s32 %v890, %v892
  %vm896 = vc.u32 %v890, %v892
  %v897 = vadd.s32 %v893, 1
  %v898 = vsel %vm896, %v897, %v893
  %v899 = vadd.s32 %v894, %v898
  %v900 = vadd.s32 %v899, 536870912
  %v901 = vshrl.u32 %v900, 30
  %v902 = vshll.u32 %v901, 30
  %v903 = vsub.s32 %v899, %v902
  %vm904 = vcmp.lt.s32.totalorder %v903, 0
  %v905 = vsub.s32 0, %v903
  %v906 = vsel %vm904, %v905, %v903
  %v907 = vclz %v906
  %v908 = vsub.s32 %v907, 2
  %vm909 = vcmp.gt.s32.totalorder 0, %v908
  %v910 = vsel %vm909, 0, %v908
  %v911 = vsub.s32 32, %v910
  %v912 = vshll.u32 %v903, %v910
  %v913 = vshrl.u32 %v895, %v911
  %v914 = vor.u32 %v912, %v913
  %v915 = vsub.s32 4294967266, %v910
  %v916 = vadd.s32 %v915, 127
  %v917 = vshll.u32 %v916, 23
  %v918 = vor.u32 4788187, %v917
  %v919 = vand.u32 2147483647, %v918
  %v921 = vcvt.s32.f32 %v914
  %v922 = vmul.f32 %v921, %v919
  %v923 = vxor.u32 %v922, 2147483648
  %v924 = vsel %vm841, %v923, %v922
  %v925 = vsub.s32 4, %v901
  %v926 = vsel %vm841, %v925, %v901
  %v927 = vsel %vm840, %v735, %v924
  %v928 = vsel %vm840, 0, %v926
  %v929 = vcosq.f32.pop %v927
  %v930 = vsinq.f32.pop %v927
  %vm931 = vweird.f32 %v735
  %v932 = vadd.s32 %v928, 3
  %v933 = vand.u32 %v932, 3
  %vm934 = vcmp.lt.s32.totalorder %v933, 2
  %vm935 = vcmp.eq.s32.totalorder %v933, 0
  %v936 = vxor.u32 %v930, 2147483648
  %v937 = vsel %vm935, %v929, %v936
  %vm938 = vcmp.eq.s32.totalorder %v933, 2
  %v939 = vxor.u32 %v929, 2147483648
  %v940 = vsel %vm938, %v939, %v930
  %v941 = vsel %vm934, %v937, %v940
  %v942 = vsel %vm931, nan, %v941
  %v943 = vsub.f32 %v942, %v838
  %v944 = vlaneseq
  %v945 = vshrl.u32 %v944, 7
  %v946 = vsub.s32 0, %v945
  %v947 = vrot.slane %v943, %v946
  %948 = vset.pattern.permute.xlu0 3
  %949 = vperm.xlu0 %948, %v236
  %v950 = vpop.permute.xlu0 %949
  %952 = vset.pattern.permute.xlu0 3
  %953 = vperm.xlu0 %952, %v237
  %v954 = vpop.permute.xlu0 %953
  %v956 = vmul.f32 %v947, %v950
  %v957 = vmul.f32 %v947, %v954
  %v958 = vlaneseq
  %v959 = vshrl.u32 %v958, 7
  %v960 = vsub.s32 0, %v959
  %v961 = vrot.slane %v838, %v960
  %v962 = vadd.f32 %v961, %v956
  %v963 = vadd.f32 %v961, %v957
  %v964 = vmul.f32 %v729, %v962
  %v965 = vmul.f32 %v730, %v963
  %v966 = vld [vmem:[%s3] sm:$0xff]
  %v967 = vld [vmem:[%s3 + $0x8] sm:$0xff]
  %vm968 = vcmask 130048
  %v970 = vsel %vm968, %v966, 0
  %v973 = vsel %vm968, %v967, 0
  %975 = vmatprep.subr.mxu0 0.0
  %976 = vmatpush1.msra.mxu0 0.0
  %977 = vmatprep.subr.mxu0 0.0
  %978 = vmatpush1.msra.mxu0 0.0
  %979 = vmatprep.subr.mxu0 0.0
  %980 = vmatpush1.msra.mxu0 0.0
  %981 = vmatprep.subr.mxu0 0.0
  %982 = vmatpush1.msra.mxu0 0.0
  %983 = vmatprep.subr.mxu0 0.0
  %984 = vmatpush1.msra.mxu0 0.0
  %985 = vmatprep.subr.mxu0 0.0
  %986 = vmatpush1.msra.mxu0 0.0
  %987 = vmatprep.subr.mxu0 0.0
  %988 = vmatpush1.msra.mxu0 0.0
  %989 = vmatprep.subr.mxu0 0.0
  %990 = vmatpush1.msra.mxu0 0.0
  %991 = vmatprep.subr.mxu0 0.0
  %992 = vmatpush1.msra.mxu0 0.0
  %993 = vmatprep.subr.mxu0 0.0
  %994 = vmatpush1.msra.mxu0 0.0
  %995 = vmatprep.subr.mxu0 0.0
  %996 = vmatpush1.msra.mxu0 0.0
  %997 = vmatprep.subr.mxu0 0.0
  %998 = vmatpush1.msra.mxu0 0.0
  %999 = vmatprep.subr.mxu0 0.0
  %1000 = vmatpush1.msra.mxu0 0.0
  %1001 = vmatprep.subr.mxu0 0.0
  %1002 = vmatpush1.msra.mxu0 0.0
  %1003 = vmatprep.subr.mxu0 0.0
  %1004 = vmatpush1.msra.mxu0 %v965
  %1005 = vmatprep.subr.mxu0 0.0
  %1006 = vmatpush1.msra.mxu0 %v964
  %1007 = vmatprep.subr.mxu0 0.0
  %1008 = vmatpush2.msra.mxu0 0.0
  %1009 = vmatprep.subr.mxu0 0.0
  %1010 = vmatpush2.msra.mxu0 0.0
  %1011 = vmatprep.subr.mxu0 0.0
  %1012 = vmatpush2.msra.mxu0 0.0
  %1013 = vmatprep.subr.mxu0 0.0
  %1014 = vmatpush2.msra.mxu0 0.0
  %1015 = vmatprep.subr.mxu0 0.0
  %1016 = vmatpush2.msra.mxu0 0.0
  %1017 = vmatprep.subr.mxu0 0.0
  %1018 = vmatpush2.msra.mxu0 0.0
  %1019 = vmatprep.subr.mxu0 0.0
  %1020 = vmatpush2.msra.mxu0 0.0
  %1021 = vmatprep.subr.mxu0 0.0
  %1022 = vmatpush2.msra.mxu0 0.0
  %1023 = vmatprep.subr.mxu0 0.0
  %1024 = vmatpush2.msra.mxu0 0.0
  %1025 = vmatprep.subr.mxu0 0.0
  %1026 = vmatpush2.msra.mxu0 0.0
  %1027 = vmatprep.subr.mxu0 0.0
  %1028 = vmatpush2.msra.mxu0 0.0
  %1029 = vmatprep.subr.mxu0 0.0
  %1030 = vmatpush2.msra.mxu0 0.0
  %1031 = vmatprep.subr.mxu0 0.0
  %1032 = vmatpush2.msra.mxu0 0.0
  %1033 = vmatprep.subr.mxu0 0.0
  %1034 = vmatpush2.msra.mxu0 0.0
  %1035 = vmatprep.subr.mxu0 0.0
  %1036 = vmatpush2.msra.mxu0 0.0
  %1037 = vmatprep.subr.mxu0 0.0
  %1038 = vmatpush2.msra.mxu0 0.0
  %1039 = vmatprep.mubr.f32.mxu0 0.0
  %1040 = vmatmul.mubr.f32.gmra.mxu0 %v970
  %v1041 = vpop.f32.mrf.mxu0
  %v1042 = vadd.f32 0.0, %v1041
  %v1043 = vpop.f32.mrf.mxu0
  %1044 = vmatprep.mubr.f32.mxu0 0.0
  %1045 = vmatmul.mubr.f32.gmra.mxu0 %v973
  %v1046 = vpop.f32.mrf.mxu0
  %v1047 = vadd.f32 0.0, %v1046
  %v1048 = vpop.f32.mrf.mxu0
  %1049 = vdwg.mxu0
  %v1050 = vmul.f32 %v1042, %v1042
  %v1051 = vmul.f32 %v1047, %v1047
  %v1052 = vld [vmem:[%s4] sm:$0xf]
  %v1054 = vsel %vm968, %v1052, 0
  %1056 = vmatprep.subr.mxu0 0.0
  %1057 = vmatpush1.msra.mxu0 0.0
  %1058 = vmatprep.subr.mxu0 0.0
  %1059 = vmatpush1.msra.mxu0 0.0
  %1060 = vmatprep.subr.mxu0 0.0
  %1061 = vmatpush1.msra.mxu0 0.0
  %1062 = vmatprep.subr.mxu0 0.0
  %1063 = vmatpush1.msra.mxu0 0.0
  %1064 = vmatprep.subr.mxu0 0.0
  %1065 = vmatpush1.msra.mxu0 0.0
  %1066 = vmatprep.subr.mxu0 0.0
  %1067 = vmatpush1.msra.mxu0 0.0
  %1068 = vmatprep.subr.mxu0 0.0
  %1069 = vmatpush1.msra.mxu0 0.0
  %1070 = vmatprep.subr.mxu0 0.0
  %1071 = vmatpush1.msra.mxu0 0.0
  %1072 = vmatprep.subr.mxu0 0.0
  %1073 = vmatpush1.msra.mxu0 0.0
  %1074 = vmatprep.subr.mxu0 0.0
  %1075 = vmatpush1.msra.mxu0 0.0
  %1076 = vmatprep.subr.mxu0 0.0
  %1077 = vmatpush1.msra.mxu0 0.0
  %1078 = vmatprep.subr.mxu0 0.0
  %1079 = vmatpush1.msra.mxu0 0.0
  %1080 = vmatprep.subr.mxu0 0.0
  %1081 = vmatpush1.msra.mxu0 0.0
  %1082 = vmatprep.subr.mxu0 0.0
  %1083 = vmatpush1.msra.mxu0 0.0
  %1084 = vmatprep.subr.mxu0 0.0
  %1085 = vmatpush1.msra.mxu0 %v1051
  %1086 = vmatprep.subr.mxu0 0.0
  %1087 = vmatpush1.msra.mxu0 %v1050
  %1088 = vmatprep.subr.mxu0 0.0
  %1089 = vmatpush2.msra.mxu0 0.0
  %1090 = vmatprep.subr.mxu0 0.0
  %1091 = vmatpush2.msra.mxu0 0.0
  %1092 = vmatprep.subr.mxu0 0.0
  %1093 = vmatpush2.msra.mxu0 0.0
  %1094 = vmatprep.subr.mxu0 0.0
  %1095 = vmatpush2.msra.mxu0 0.0
  %1096 = vmatprep.subr.mxu0 0.0
  %1097 = vmatpush2.msra.mxu0 0.0
  %1098 = vmatprep.subr.mxu0 0.0
  %1099 = vmatpush2.msra.mxu0 0.0
  %1100 = vmatprep.subr.mxu0 0.0
  %1101 = vmatpush2.msra.mxu0 0.0
  %1102 = vmatprep.subr.mxu0 0.0
  %1103 = vmatpush2.msra.mxu0 0.0
  %1104 = vmatprep.subr.mxu0 0.0
  %1105 = vmatpush2.msra.mxu0 0.0
  %1106 = vmatprep.subr.mxu0 0.0
  %1107 = vmatpush2.msra.mxu0 0.0
  %1108 = vmatprep.subr.mxu0 0.0
  %1109 = vmatpush2.msra.mxu0 0.0
  %1110 = vmatprep.subr.mxu0 0.0
  %1111 = vmatpush2.msra.mxu0 0.0
  %1112 = vmatprep.subr.mxu0 0.0
  %1113 = vmatpush2.msra.mxu0 0.0
  %1114 = vmatprep.subr.mxu0 0.0
  %1115 = vmatpush2.msra.mxu0 0.0
  %1116 = vmatprep.subr.mxu0 0.0
  %1117 = vmatpush2.msra.mxu0 0.0
  %1118 = vmatprep.subr.mxu0 0.0
  %1119 = vmatpush2.msra.mxu0 0.0
  %1120 = vmatprep.mubr.f32.mxu0 0.0
  %1121 = vmatmul.mubr.f32.gmra.mxu0 %v1054
  %v1122 = vpop.f32.mrf.mxu0
  %v1123 = vadd.f32 0.0, %v1122
  %v1124 = vpop.f32.mrf.mxu0
  %1125 = vdwg.mxu0
  %v1126 = vand.u32 2147483647, %v1123
  %vm1127 = vcmp.le.f32.partialorder %v1126, 1e-12
  %v1128 = vsel %vm1127, 0.0, %v1123
  %1129 = vst [vmem:[%s5] sm:$0xf] %v1128
  // Predicated region
  $region18: #{_pqc_forward_impl.1} parent=0 // pred_check
    _
  $region19: #{_pqc_forward_impl.1} parent=0 // pred_check_branch
    %1131 = sbr.rel (0) target = $region21
  $region20: #{_pqc_forward_impl.1} parent=0 // pred_region
    _
  $region21: #{_pqc_forward_impl.1} parent=0 // pred_fallthru
    _
  // Predicated region
  $region22: #{_pqc_forward_impl.1} parent=0 // pred_check
    _
  $region23: #{_pqc_forward_impl.1} parent=0 // pred_check_branch
    %1133 = sbr.rel (0) target = $region25
  $region24: #{_pqc_forward_impl.1} parent=0 // pred_region
    _
  $region25: #{_pqc_forward_impl.1} parent=0 // pred_fallthru
    _

</llo_original>
